<compile_context>
chip_gen: v6e
topology: v6e:2x2x1
jax: 0.10.0
libtpu: 0.0.40
codegen_flags: <defaults>
</compile_context>

<pallas_src>
import jax
import jax.numpy as jnp
from jax.experimental import pallas as pl
from jax.experimental.pallas import tpu as pltpu


def mlp_kernel(x_ref, w1_ref, b1_ref, w2r_ref, b2_ref, o_ref):
    # Hidden layer on the MXU: bf16 inputs, f32 accumulation.
    h = jnp.dot(x_ref[...], w1_ref[...], preferred_element_type=jnp.float32)
    h = h + b1_ref[...]              # (TM, 256) f32 bias add (VPU)
    h = jnp.maximum(h, 0.0)          # ReLU in f32 (VPU)
    # Output layer (256 -> 1): elementwise multiply + lane reduction (VPU + XLU),
    # keeping the MXU slot free for the next grid step's first matmul.
    out = jnp.sum(h * w2r_ref[...], axis=-1, keepdims=True) + b2_ref[0, 0]
    o_ref[...] = out.astype(o_ref.dtype)


def _round_up(a, m):
    return ((a + m - 1) // m) * m


def mlp_forward(x, w1, b1, w2, b2, *, tm=512):
    """x: (B, D) f32; w1: (D, 256); b1: (1, 256); w2: (256, 1); b2: (1, 1)."""
    B, D = x.shape
    H = w1.shape[1]
    O = w2.shape[1]

    # bf16 MXU inputs (halves HBM bytes for x / w1); everything downstream stays f32.
    x_bf = x.astype(jnp.bfloat16)
    w1_bf = w1.astype(jnp.bfloat16)
    b1_r = jnp.reshape(b1, (1, H)).astype(jnp.float32)
    w2_row = jnp.reshape(w2, (1, H)).astype(jnp.float32)   # second layer as a row vector
    b2_s = jnp.reshape(b2, (1, 1)).astype(jnp.float32)

    # Batch tile: as large as the VMEM budget allows, multiple of 8 sublanes.
    # Budget against v7x (64 MiB physical VMEM) with headroom; also fine on v5e/v6e.
    vmem_budget = 48 * 1024 * 1024

    def vmem_need(tm_):
        return (2 * tm_ * D * 2          # double-buffered x tile (bf16)
                + 2 * tm_ * O * 4        # double-buffered output tile (f32)
                + D * H * 2              # resident w1 (bf16)
                + 2 * H * 4)             # resident b1 + w2_row (f32)

    TM = max(8, min(_round_up(tm, 8), _round_up(B, 8)))
    while TM > 8 and vmem_need(TM) > vmem_budget:
        TM //= 2
    TM = max(8, (TM // 8) * 8)

    B_pad = _round_up(B, TM)
    if B_pad != B:
        x_bf = jnp.pad(x_bf, ((0, B_pad - B), (0, 0)))
    grid = (B_pad // TM,)

    vmem_limit = int(min(max(2 * vmem_need(TM), 16 * 1024 * 1024), 64 * 1024 * 1024))

    cost = pl.CostEstimate(
        flops=2 * B_pad * D * H + 3 * B_pad * H,
        transcendentals=0,
        bytes_accessed=(B_pad * D * 2 + D * H * 2 + 2 * H * 4 + 4 + B_pad * O * 4),
    )

    out = pl.pallas_call(
        mlp_kernel,
        out_shape=jax.ShapeDtypeStruct((B_pad, O), jnp.float32),
        grid=grid,
        in_specs=[
            pl.BlockSpec((TM, D), lambda i: (i, 0)),              # x tile (pipelined over batch)
            pl.BlockSpec((D, H), lambda i: (0, 0)),               # w1, resident
            pl.BlockSpec((1, H), lambda i: (0, 0)),               # b1, resident
            pl.BlockSpec((1, H), lambda i: (0, 0)),               # w2 as row vector, resident
            pl.BlockSpec(memory_space=pltpu.MemorySpace.SMEM),    # b2 scalar in SMEM
        ],
        out_specs=pl.BlockSpec((TM, O), lambda i: (i, 0)),
        compiler_params=pltpu.CompilerParams(
            dimension_semantics=("parallel",),
            vmem_limit_bytes=vmem_limit,
        ),
        cost_estimate=cost,
    )(x_bf, w1_bf, b1_r, w2_row, b2_s)
    return out[:B]


def init_params(key, input_size, hidden=256, out=1):
    """Deterministic init mimicking PyTorch nn.Linear defaults (U[-1/sqrt(fan_in), +1/sqrt(fan_in)])."""
    k1, k2, k3, k4 = jax.random.split(key, 4)
    bound1 = 1.0 / jnp.sqrt(jnp.float32(input_size))
    bound2 = 1.0 / jnp.sqrt(jnp.float32(hidden))
    # Stored already transposed to (in, out) for the kernel.
    w1 = jax.random.uniform(k1, (input_size, hidden), jnp.float32, -bound1, bound1)
    b1 = jax.random.uniform(k2, (1, hidden), jnp.float32, -bound1, bound1)
    w2 = jax.random.uniform(k3, (hidden, out), jnp.float32, -bound2, bound2)
    b2 = jax.random.uniform(k4, (1, out), jnp.float32, -bound2, bound2)
    return w1, b1, w2, b2


if __name__ == "__main__":
    key = jax.random.PRNGKey(0)
    kx, kp = jax.random.split(key)

    batch, input_size = 8, 16
    x = jax.random.normal(kx, (batch, input_size), jnp.float32)
    w1, b1, w2, b2 = init_params(kp, input_size)

    y = mlp_forward(x, w1, b1, w2, b2)
    y = jax.block_until_ready(y)

    # Reference in plain JAX with the same bf16 rounding of the MXU inputs, f32 math otherwise.
    x_r = x.astype(jnp.bfloat16).astype(jnp.float32)
    w1_r = w1.astype(jnp.bfloat16).astype(jnp.float32)
    h_r = jnp.maximum(x_r @ w1_r + b1, 0.0)
    y_ref = h_r @ w2 + b2

    assert y.shape == (batch, 1)
    assert jnp.allclose(y, y_ref, atol=1e-3, rtol=1e-3), float(jnp.max(jnp.abs(y - y_ref)))

    print("KERNEL_OK")
</pallas_src>

<mosaic_0001>
module attributes {stable_mosaic.version = 11 : i64} {
  func.func @mlp_kernel(%arg0: i32, %arg1: memref<8x16xbf16, #tpu.memory_space<vmem>>, %arg2: memref<16x256xbf16, #tpu.memory_space<vmem>>, %arg3: memref<1x256xf32, #tpu.memory_space<vmem>>, %arg4: memref<1x256xf32, #tpu.memory_space<vmem>>, %arg5: memref<1x1xf32, #tpu.memory_space<smem>>, %arg6: memref<8x1xf32, #tpu.memory_space<vmem>>) attributes {dimension_semantics = [#tpu.dimension_semantics<parallel>], iteration_bounds = array<i64: 1>, scalar_prefetch = 0 : i64, scratch_operands = 0 : i64, tpu.core_type = #tpu.core_type<tc>, window_params = [{transform_indices = @transform_0, window_bounds = array<i64: 8, 16>}, {pipeline_mode = #tpu.pipeline_mode<synchronous>, transform_indices = @transform_1, window_bounds = array<i64: 16, 256>}, {pipeline_mode = #tpu.pipeline_mode<synchronous>, transform_indices = @transform_2, window_bounds = array<i64: 1, 256>}, {pipeline_mode = #tpu.pipeline_mode<synchronous>, transform_indices = @transform_3, window_bounds = array<i64: 1, 256>}, {transform_indices = @transform_4, window_bounds = array<i64: 1, 1>}, {transform_indices = @transform_5, window_bounds = array<i64: 8, 1>}]} {
    %c0 = arith.constant 0 : index
    %c0_0 = arith.constant 0 : index
    %0 = vector.load %arg1[%c0, %c0_0] : memref<8x16xbf16, #tpu.memory_space<vmem>>, vector<8x16xbf16>
    %c0_1 = arith.constant 0 : index
    %c0_2 = arith.constant 0 : index
    %1 = vector.load %arg2[%c0_1, %c0_2] : memref<16x256xbf16, #tpu.memory_space<vmem>>, vector<16x256xbf16>
    %cst = arith.constant dense<0.000000e+00> : vector<8x256xf32>
    %2 = tpu.matmul %0, %1, %cst {dimension_numbers = #tpu.dot_dimension_numbers<[1], [0], [0], [1], [0, 0, 1, 1], [], []>} : vector<8x16xbf16>, vector<16x256xbf16>, vector<8x256xf32> -> vector<8x256xf32>
    %c0_3 = arith.constant 0 : index
    %c0_4 = arith.constant 0 : index
    %3 = vector.load %arg3[%c0_3, %c0_4] : memref<1x256xf32, #tpu.memory_space<vmem>>, vector<1x256xf32>
    %4 = vector.broadcast %3 : vector<1x256xf32> to vector<8x256xf32>
    %5 = arith.addf %2, %4 : vector<8x256xf32>
    %cst_5 = arith.constant 0.000000e+00 : f32
    %6 = vector.broadcast %cst_5 : f32 to vector<8x256xf32>
    %7 = arith.maximumf %5, %6 : vector<8x256xf32>
    %c0_6 = arith.constant 0 : index
    %c0_7 = arith.constant 0 : index
    %8 = vector.load %arg4[%c0_6, %c0_7] : memref<1x256xf32, #tpu.memory_space<vmem>>, vector<1x256xf32>
    %9 = vector.broadcast %8 : vector<1x256xf32> to vector<8x256xf32>
    %10 = arith.mulf %7, %9 : vector<8x256xf32>
    %cst_8 = arith.constant dense<0.000000e+00> : vector<8xf32>
    %11 = vector.multi_reduction <add>, %10, %cst_8 [1] : vector<8x256xf32> to vector<8xf32>
    %12 = vector.shape_cast %11 : vector<8xf32> to vector<8x1xf32>
    %c0_9 = arith.constant 0 : index
    %c0_10 = arith.constant 0 : index
    %13 = memref.load %arg5[%c0_9, %c0_10] : memref<1x1xf32, #tpu.memory_space<smem>>
    %14 = vector.broadcast %13 : f32 to vector<8x1xf32>
    %15 = arith.addf %12, %14 : vector<8x1xf32>
    %c0_11 = arith.constant 0 : index
    %c0_12 = arith.constant 0 : index
    %16 = vector.load %arg6[%c0_11, %c0_12] : memref<8x1xf32, #tpu.memory_space<vmem>>, vector<8x1xf32>
    tpu.vector_store %arg6[%c0_11, %c0_12], %15 {strides = array<i32>} : memref<8x1xf32, #tpu.memory_space<vmem>>, vector<8x1xf32>,
    return
  }
  func.func @transform_0(%arg0: i32) -> (i32, i32) {
    %c0_i32 = arith.constant 0 : i32
    %c0_i32_0 = arith.constant 0 : i32
    return %arg0, %c0_i32 : i32, i32
  }
  func.func @transform_1(%arg0: i32) -> (i32, i32) {
    %c0_i32 = arith.constant 0 : i32
    %c0_i32_0 = arith.constant 0 : i32
    %c0_i32_1 = arith.constant 0 : i32
    return %c0_i32, %c0_i32_0 : i32, i32
  }
  func.func @transform_2(%arg0: i32) -> (i32, i32) {
    %c0_i32 = arith.constant 0 : i32
    %c0_i32_0 = arith.constant 0 : i32
    %c0_i32_1 = arith.constant 0 : i32
    return %c0_i32, %c0_i32_0 : i32, i32
  }
  func.func @transform_3(%arg0: i32) -> (i32, i32) {
    %c0_i32 = arith.constant 0 : i32
    %c0_i32_0 = arith.constant 0 : i32
    %c0_i32_1 = arith.constant 0 : i32
    return %c0_i32, %c0_i32_0 : i32, i32
  }
  func.func @transform_4(%arg0: i32) -> (i32, i32) {
    %c0_i32 = arith.constant 0 : i32
    %c0_i32_0 = arith.constant 0 : i32
    %c0_i32_1 = arith.constant 0 : i32
    return %c0_i32, %c0_i32_0 : i32, i32
  }
  func.func @transform_5(%arg0: i32) -> (i32, i32) {
    %c0_i32 = arith.constant 0 : i32
    %c0_i32_0 = arith.constant 0 : i32
    return %arg0, %c0_i32 : i32, i32
  }
}

</mosaic_0001>

<llo_original>
// kernel: tpu_custom_call.1
$region0: #{tpu_custom_call.1}
  #allocation0 [shape = 'u32[]', space=smem, size = 0x4, offset = 0x4, fixed_abs, tag = 'smem constant byte address 0x4 - core index']
  #allocation1 [shape = 'u32[144,128]{1,0:T(1,128)}', space=vmem, size = 0x12000, scoped, tag = 'internal scratch']
  #allocation2 [shape = 'f32[1,1]{1,0:T(1,128)S(6)}', space=smem, size = 0x200, scoped, tag = 'scoped memory for tpu_custom_call.1']
  %s0 = inlined_call_operand.hbm [shape: bf16[8,16], index: 0, kind: input, shape index: {}]
  %s1 = inlined_call_operand.hbm [shape: bf16[16,256], index: 1, kind: input, shape index: {}]
  %s2 = inlined_call_operand.vmem [shape: f32[1,256], index: 2, kind: input, shape index: {}]
  %s3 = inlined_call_operand.vmem [shape: f32[1,256], index: 3, kind: input, shape index: {}]
  %s4 = inlined_call_operand.<no memory space> [shape: f32[1,1], index: 4, kind: input, shape index: {}]
  %s5 = inlined_call_operand.vmem [shape: f32[8,1], index: 5, kind: output, shape index: {}]
  %s6 = sld [smem:[#allocation0]]
  $region38: #{tpu_custom_call.1} parent=0
    _
  %s8 = ssub.s32 1, %s6
  %s9 = scalar_select 0, %s8, %s6
  %10 = sst [smem:[#allocation2]] %s4
  $region1: #{tpu_custom_call.1} parent=0
    #allocation3 [shape = 'u8[2048]{0}', space=vmem, size = 0x800, scoped, tag = 'input window, operand 0, single buffered']
    #allocation4 [shape = 's32[1]{0}', space=sflag, size = 0x4, scoped, tag = 'scoped memory for tpu_custom_call.1']
    #allocation5 [shape = 'u8[8192]{0}', space=vmem, size = 0x2000, scoped, tag = 'input window, operand 1, single buffered']
    #allocation6 [shape = 's32[1]{0}', space=sflag, size = 0x4, scoped, tag = 'scoped memory for tpu_custom_call.1']
    %11 = vsyncpa [#allocation4], 0
    %12 = vsyncpa [#allocation6], 0
    // Predicated region
    $region2: #{tpu_custom_call.1} parent=1 // pred_check
      _
    $region3: #{tpu_custom_call.1} parent=1 // pred_check_branch
      %14 = sbr.rel (0) target = $region5
    $region4: #{tpu_custom_call.1} parent=1 // pred_region
      %s16 = ssub.s32 64, 64
      %17 = vsyncadd [#allocation4], %s16
      %s19 = sshll.u32 [#allocation3], 4
      %s20 = int_to_ptr.vmem [resolvable:$true] %s19
      %22 = dma.hbm_to_vmem [thread:$0]  %s0, 64, %s20, [#allocation4]
    $region5: #{tpu_custom_call.1} parent=1 // pred_fallthru
      _
    // Predicated region
    $region6: #{tpu_custom_call.1} parent=1 // pred_check
      _
    $region7: #{tpu_custom_call.1} parent=1 // pred_check_branch
      %24 = sbr.rel (0) target = $region9
    $region8: #{tpu_custom_call.1} parent=1 // pred_region
      %s26 = ssub.s32 256, 256
      %27 = vsyncadd [#allocation6], %s26
      %s28 = sshll.u32 [#allocation5], 4
      %s29 = int_to_ptr.vmem [resolvable:$true] %s28
      %34 = dma.hbm_to_vmem [thread:$0]  %s1, 256, %s29, [#allocation6], 128, 128, 8
    $region9: #{tpu_custom_call.1} parent=1 // pred_fallthru
      _
    // Predicated region
    $region10: #{tpu_custom_call.1} parent=1 // pred_check
      _
    $region11: #{tpu_custom_call.1} parent=1 // pred_check_branch
      %36 = sbr.rel (0) target = $region13
    $region12: #{tpu_custom_call.1} parent=1 // pred_region
      _
    $region13: #{tpu_custom_call.1} parent=1 // pred_fallthru
      _
    // Predicated region
    $region14: #{tpu_custom_call.1} parent=1 // pred_check
      _
    $region15: #{tpu_custom_call.1} parent=1 // pred_check_branch
      %38 = sbr.rel (0) target = $region17
    $region16: #{tpu_custom_call.1} parent=1 // pred_region
      _
    $region17: #{tpu_custom_call.1} parent=1 // pred_fallthru
      _
    // Predicated region
    $region18: #{tpu_custom_call.1} parent=1 // pred_check
      _
    $region19: #{tpu_custom_call.1} parent=1 // pred_check_branch
      %40 = sbr.rel (0) target = $region21
    $region20: #{tpu_custom_call.1} parent=1 // pred_region
      _
    $region21: #{tpu_custom_call.1} parent=1 // pred_fallthru
      _
    // Predicated region
    $region22: #{tpu_custom_call.1} parent=1 // pred_check
      _
    $region23: #{tpu_custom_call.1} parent=1 // pred_check_branch
      %42 = sbr.rel (0) target = $region25
    $region24: #{tpu_custom_call.1} parent=1 // pred_region
      %43 = dma.done [#allocation4], 64
    $region25: #{tpu_custom_call.1} parent=1 // pred_fallthru
      _
    // Predicated region
    $region26: #{tpu_custom_call.1} parent=1 // pred_check
      _
    $region27: #{tpu_custom_call.1} parent=1 // pred_check_branch
      %45 = sbr.rel (0) target = $region29
    $region28: #{tpu_custom_call.1} parent=1 // pred_region
      %46 = dma.done [#allocation6], 256
    $region29: #{tpu_custom_call.1} parent=1 // pred_fallthru
      _
    %v48 = vld [vmem:[#allocation3] sm:$0xf]
    %v49 = vld [vmem:[#allocation5] sm:$0xff]
    %v50 = vld [vmem:[#allocation5 + $0x8] sm:$0xff]
    %v51 = vld [vmem:[%s2] sm:$0x3]
    %v53 = vlaneseq
    %v54 = vshrl.u32 %v53, 7
    %v55 = vsub.s32 0, %v54
    %v56 = vrot.slane %v51, %v55
    %v57 = vlaneseq
    %v58 = vshrl.u32 %v57, 7
    %v59 = vsub.s32 1, %v58
    %v60 = vrot.slane %v51, %v59
    %v65 = vunpack.c.l.b16 %v49
    %v66 = vunpack.c.h.b16 %v49
    %v67 = vunpack.c.l.b16 %v50
    %v68 = vunpack.c.h.b16 %v50
    %v69 = vpack.c.b16 %v67, %v65
    %v70 = vpack.c.b16 %v68, %v66
    %vm73 = vcmask 130048
    %v75 = vsel %vm73, %v48, 0
    %77 = vmatprep.subr.bf16.mxu0 0
    %78 = vmatpush1.bf16.msra.mxu0 0
    %79 = vmatprep.subr.bf16.mxu0 0
    %80 = vmatpush1.bf16.msra.mxu0 0
    %81 = vmatprep.subr.bf16.mxu0 0
    %82 = vmatpush1.bf16.msra.mxu0 0
    %83 = vmatprep.subr.bf16.mxu0 0
    %84 = vmatpush1.bf16.msra.mxu0 0
    %85 = vmatprep.subr.bf16.mxu0 0
    %86 = vmatpush1.bf16.msra.mxu0 0
    %87 = vmatprep.subr.bf16.mxu0 0
    %88 = vmatpush1.bf16.msra.mxu0 0
    %89 = vmatprep.subr.bf16.mxu0 0
    %90 = vmatpush1.bf16.msra.mxu0 0
    %91 = vmatprep.subr.bf16.mxu0 %v70
    %92 = vmatpush1.bf16.msra.mxu0 %v69
    %93 = vmatprep.subr.bf16.mxu0 0
    %94 = vmatpush2.bf16.msra.mxu0 0
    %95 = vmatprep.subr.bf16.mxu0 0
    %96 = vmatpush2.bf16.msra.mxu0 0
    %97 = vmatprep.subr.bf16.mxu0 0
    %98 = vmatpush2.bf16.msra.mxu0 0
    %99 = vmatprep.subr.bf16.mxu0 0
    %100 = vmatpush2.bf16.msra.mxu0 0
    %101 = vmatprep.subr.bf16.mxu0 0
    %102 = vmatpush2.bf16.msra.mxu0 0
    %103 = vmatprep.subr.bf16.mxu0 0
    %104 = vmatpush2.bf16.msra.mxu0 0
    %105 = vmatprep.subr.bf16.mxu0 0
    %106 = vmatpush2.bf16.msra.mxu0 0
    %107 = vmatprep.subr.bf16.mxu0 0
    %108 = vmatpush2.bf16.msra.mxu0 0
    %109 = vmatprep.mubr.bf16.mxu0 0
    %110 = vmatmul.mubr.bf16.gmra.mxu0 %v75
    %v111 = vpop.f32.mrf.mxu0
    %v112 = vadd.f32 %v56, %v111
    %v113 = vpop.f32.mrf.mxu0
    %v114 = vadd.f32 %v60, %v113
    %v115 = vpop.f32.mrf.mxu0
    %v116 = vpop.f32.mrf.mxu0
    %117 = vdwg.mxu0
    %v118 = vmax.f32 %v112, 0.0
    %v119 = vmax.f32 %v114, 0.0
    %v120 = vld [vmem:[%s3] sm:$0x3]
    %v122 = vlaneseq
    %v123 = vshrl.u32 %v122, 7
    %v124 = vsub.s32 0, %v123
    %v125 = vrot.slane %v120, %v124
    %v126 = vlaneseq
    %v127 = vshrl.u32 %v126, 7
    %v128 = vsub.s32 1, %v127
    %v129 = vrot.slane %v120, %v128
    %v132 = vmul.f32 %v118, %v125
    %v133 = vmul.f32 %v119, %v129
    %v134 = vadd.f32 %v132, %v133
    %135 = vadd.xlane.f32.xlu0 %v134
    %v136 = vpop.xlane.xlu0 %135
    %s137 = sld [smem:[#allocation2]]
    %v138 = vstv %s137
    %v139 = vadd.f32 %v136, %v138
    %vm140 = vcmask 7168
    %141 = vst.msk [vmem:[%s5] sm:$0xff] %vm140, %v139
    // Predicated region
    $region30: #{tpu_custom_call.1} parent=1 // pred_check
      _
    $region31: #{tpu_custom_call.1} parent=1 // pred_check_branch
      %143 = sbr.rel (0) target = $region33
    $region32: #{tpu_custom_call.1} parent=1 // pred_region
      _
    $region33: #{tpu_custom_call.1} parent=1 // pred_fallthru
      _
    // Predicated region
    $region34: #{tpu_custom_call.1} parent=1 // pred_check
      _
    $region35: #{tpu_custom_call.1} parent=1 // pred_check_branch
      %145 = sbr.rel (0) target = $region37
    $region36: #{tpu_custom_call.1} parent=1 // pred_region
      _
    $region37: #{tpu_custom_call.1} parent=1 // pred_fallthru
      _
    %146 = vsyncpa [#allocation4], 1
    %147 = vsyncpa [#allocation6], 1

</llo_original>
